<compile_context>
chip_gen: v7x
topology: tpu7x:2x2x1
jax: 0.10.0
libtpu: 0.0.40
codegen_flags: <defaults>
</compile_context>

<pallas_src>
import functools
import math

import jax
import jax.numpy as jnp
from jax.experimental import pallas as pl
from jax.experimental.pallas import tpu as pltpu


def _rmsnorm_kernel(x_ref, scale_ref, o_ref, *, eps, low_precision_mul):
    x = x_ref[...]                                             # (tm, D) input dtype
    xf = x.astype(jnp.float32)
    ms = jnp.mean(xf * xf, axis=-1, keepdims=True)             # (tm, 1)  f32 reduce
    inv = jax.lax.rsqrt(ms + jnp.float32(eps))                 # EUP rsqrt, f32

    if low_precision_mul and x.dtype != jnp.float32:
        # Normalize chain + store in the packed input dtype (bf16 VALU on v6e/v7x).
        inv_n = inv.astype(x.dtype)
        scale = scale_ref[...].astype(x.dtype)
        o_ref[...] = (x * inv_n * scale).astype(o_ref.dtype)
    else:
        # Full-f32 path (f32 inputs, or v5e which has no bf16 VALU).
        scale = scale_ref[...].astype(jnp.float32)
        o_ref[...] = (xf * inv * scale).astype(o_ref.dtype)


def _hw_profile():
    """Trace-time hardware query with safe fallbacks."""
    try:
        vmem_cap = int(pltpu.get_tpu_info().vmem_capacity_bytes)
    except Exception:
        vmem_cap = 128 << 20
    try:
        kind = jax.devices()[0].device_kind.lower()
    except Exception:
        kind = ""
    # Chips where the "parallel" grid axis shards across 2 TensorCores.
    num_tc = 2 if any(t in kind for t in ("v7", "v5p", "v4")) else 1
    # v5e has no bf16 VALU/EUP: keep all in-body math in f32 there.
    is_v5e = ("v5e" in kind) or ("v5 lite" in kind) or ("v5litepod" in kind)
    return vmem_cap, num_tc, is_v5e


def _select_tile_and_vmem(M, D, itemsize, vmem_cap, num_tc):
    """Pick the row-tile size and a scoped-VMEM budget for this generation."""
    small_vmem = vmem_cap <= (64 << 20)          # v7x-class TensorCore
    if small_vmem:
        target_block_bytes = 3 << 20             # ~3 MiB input block
        vmem_limit = 48 << 20                    # headroom under 64 MiB physical
    else:
        target_block_bytes = 6 << 20             # ~6 MiB input block (v5e/v6e)
        vmem_limit = 100 << 20                   # headroom under 128 MiB physical

    sub = 16 if itemsize == 2 else 8             # sublane granularity (packed bf16)
    row_bytes = max(1, D * itemsize)

    tm = max(sub, (target_block_bytes // row_bytes) // sub * sub)

    # Megacore: make sure the parallel axis has >= 2*num_tc steps when possible.
    if num_tc > 1 and M > sub:
        per_core = (M + 2 * num_tc - 1) // (2 * num_tc)
        per_core = ((per_core + sub - 1) // sub) * sub
        tm = min(tm, max(sub, per_core))

    tm = min(tm, M)

    def working_set(t):
        pipeline = 4 * t * D * itemsize          # 2x input + 2x output, double-buffered
        f32_temps = 3 * t * D * 4                # upcast x, x*x, normalized product
        return pipeline + f32_temps + 2 * D * 4 + (1 << 20)

    # Shrink the tile until the full working set fits under the scoped limit.
    while tm > sub and working_set(tm) > vmem_limit:
        tm = max(sub, (tm // 2) // sub * sub)
    if tm >= M:
        tm = M                                   # full-extent block is always legal

    vmem_bytes = int(min(max(working_set(tm), 4 << 20), vmem_limit))
    return tm, vmem_bytes


@functools.partial(jax.jit, static_argnames=("eps", "block_rows"))
def rmsnorm(x, scale, *, eps=1e-8, block_rows=None):
    """x: (..., dim). scale: (dim,). Returns same shape/dtype as x.

    For best store bandwidth, dim should be >= 128 and ideally a multiple of
    128 (lane-dense output slab); other sizes are correct but use masked stores.
    """
    orig_shape = x.shape
    D = orig_shape[-1]
    M = int(math.prod(orig_shape[:-1])) if len(orig_shape) > 1 else 1

    x2d = x.reshape(M, D)
    scale2d = scale.reshape(1, D)

    itemsize = jnp.dtype(x.dtype).itemsize
    vmem_cap, num_tc, is_v5e = _hw_profile()

    if block_rows is not None:
        tm_eff = min(int(block_rows), M)
        _, vmem_bytes = _select_tile_and_vmem(M, D, itemsize, vmem_cap, num_tc)
    else:
        tm_eff, vmem_bytes = _select_tile_and_vmem(M, D, itemsize, vmem_cap, num_tc)

    grid = ((M + tm_eff - 1) // tm_eff,)

    cost = pl.CostEstimate(
        flops=int(4 * M * D),                    # square, reduce, 2 muls (order of magnitude)
        transcendentals=int(M),                  # one rsqrt per row
        bytes_accessed=int(2 * M * D * itemsize + D * jnp.dtype(scale.dtype).itemsize),
    )

    kernel = functools.partial(
        _rmsnorm_kernel,
        eps=eps,
        low_precision_mul=not is_v5e,            # bf16 VALU only on v6e/v7x
    )

    out2d = pl.pallas_call(
        kernel,
        out_shape=jax.ShapeDtypeStruct((M, D), x.dtype),
        grid_spec=pltpu.PrefetchScalarGridSpec(
            num_scalar_prefetch=0,
            grid=grid,
            in_specs=[
                pl.BlockSpec((tm_eff, D), lambda i: (i, 0)),   # x row tile
                pl.BlockSpec((1, D), lambda i: (0, 0)),        # scale (resident)
            ],
            out_specs=pl.BlockSpec((tm_eff, D), lambda i: (i, 0)),
        ),
        compiler_params=pltpu.CompilerParams(
            dimension_semantics=("parallel",),
            vmem_limit_bytes=vmem_bytes,
        ),
        cost_estimate=cost,
    )(x2d, scale2d)

    return out2d.reshape(orig_shape)


def _reference(x, scale, eps=1e-8):
    xf = x.astype(jnp.float32)
    ms = jnp.mean(xf * xf, axis=-1, keepdims=True)
    return (xf * jax.lax.rsqrt(ms + eps) * scale.astype(jnp.float32)).astype(x.dtype)


if __name__ == "__main__":
    batch, seq, dim = 2, 8, 128
    eps = 1e-8

    key = jax.random.PRNGKey(0)
    kx, ks = jax.random.split(key, 2)

    x = jax.random.normal(kx, (batch, seq, dim), jnp.float32)
    # Module initializes scale to ones; perturb it so the multiply is exercised.
    scale = 1.0 + 0.1 * jax.random.normal(ks, (dim,), jnp.float32)

    out = rmsnorm(x, scale, eps=eps)
    out = jax.block_until_ready(out)

    ref = _reference(x, scale, eps=eps)
    assert out.shape == x.shape and out.dtype == x.dtype
    assert jnp.allclose(out, ref, atol=1e-5, rtol=1e-5), "mismatch vs reference"

    print("KERNEL_OK")
</pallas_src>

<mosaic_0001>
module attributes {stable_mosaic.version = 11 : i64} {
  func.func @_rmsnorm_kernel(%arg0: i32, %arg1: memref<16x128xf32, #tpu.memory_space<vmem>>, %arg2: memref<1x128xf32, #tpu.memory_space<vmem>>, %arg3: memref<16x128xf32, #tpu.memory_space<vmem>>) attributes {dimension_semantics = [#tpu.dimension_semantics<parallel>], iteration_bounds = array<i64: 1>, scalar_prefetch = 0 : i64, scratch_operands = 0 : i64, tpu.core_type = #tpu.core_type<tc>, window_params = [{transform_indices = @transform_0, window_bounds = array<i64: 16, 128>}, {pipeline_mode = #tpu.pipeline_mode<synchronous>, transform_indices = @transform_1, window_bounds = array<i64: 1, 128>}, {transform_indices = @transform_2, window_bounds = array<i64: 16, 128>}]} {
    %c0 = arith.constant 0 : index
    %c0_0 = arith.constant 0 : index
    %0 = vector.load %arg1[%c0, %c0_0] : memref<16x128xf32, #tpu.memory_space<vmem>>, vector<16x128xf32>
    %1 = arith.mulf %0, %0 : vector<16x128xf32>
    %cst = arith.constant dense<0.000000e+00> : vector<16xf32>
    %2 = vector.multi_reduction <add>, %1, %cst [1] : vector<16x128xf32> to vector<16xf32>
    %3 = vector.shape_cast %2 : vector<16xf32> to vector<16x1xf32>
    %cst_1 = arith.constant 1.280000e+02 : f32
    %4 = vector.broadcast %cst_1 : f32 to vector<16x1xf32>
    %5 = arith.divf %3, %4 : vector<16x1xf32>
    %cst_2 = arith.constant 9.99999993E-9 : f32
    %6 = vector.broadcast %cst_2 : f32 to vector<16x1xf32>
    %7 = arith.addf %5, %6 : vector<16x1xf32>
    %8 = math.rsqrt %7 : vector<16x1xf32>
    %c0_3 = arith.constant 0 : index
    %c0_4 = arith.constant 0 : index
    %9 = vector.load %arg2[%c0_3, %c0_4] : memref<1x128xf32, #tpu.memory_space<vmem>>, vector<1x128xf32>
    %10 = vector.broadcast %8 : vector<16x1xf32> to vector<16x128xf32>
    %11 = arith.mulf %0, %10 : vector<16x128xf32>
    %12 = vector.broadcast %9 : vector<1x128xf32> to vector<16x128xf32>
    %13 = arith.mulf %11, %12 : vector<16x128xf32>
    %c0_5 = arith.constant 0 : index
    %c0_6 = arith.constant 0 : index
    %14 = vector.load %arg3[%c0_5, %c0_6] : memref<16x128xf32, #tpu.memory_space<vmem>>, vector<16x128xf32>
    tpu.vector_store %arg3[%c0_5, %c0_6], %13 {strides = array<i32>} : memref<16x128xf32, #tpu.memory_space<vmem>>, vector<16x128xf32>,
    return
  }
  func.func @transform_0(%arg0: i32) -> (i32, i32) {
    %c0_i32 = arith.constant 0 : i32
    %c0_i32_0 = arith.constant 0 : i32
    return %arg0, %c0_i32 : i32, i32
  }
  func.func @transform_1(%arg0: i32) -> (i32, i32) {
    %c0_i32 = arith.constant 0 : i32
    %c0_i32_0 = arith.constant 0 : i32
    %c0_i32_1 = arith.constant 0 : i32
    return %c0_i32, %c0_i32_0 : i32, i32
  }
  func.func @transform_2(%arg0: i32) -> (i32, i32) {
    %c0_i32 = arith.constant 0 : i32
    %c0_i32_0 = arith.constant 0 : i32
    return %arg0, %c0_i32 : i32, i32
  }
}

</mosaic_0001>

<llo_original>
// kernel: rmsnorm.1
$region0: #{rmsnorm.1}
  #allocation0 [shape = 'u32[]', space=smem, size = 0x4, offset = 0x4, fixed_abs, tag = 'smem constant byte address 0x4 - core index']
  #allocation1 [shape = 'u32[144,128]{1,0:T(1,128)}', space=vmem, size = 0x12000, scoped, tag = 'internal scratch']
  %s0 = inlined_call_operand.hbm [shape: f32[16,128], index: 0, kind: input, shape index: {}]
  %s1 = inlined_call_operand.vmem [shape: f32[1,128], index: 1, kind: input, shape index: {}]
  %s2 = inlined_call_operand.hbm [shape: f32[16,128], index: 2, kind: output, shape index: {}]
  %s3 = sld [smem:[#allocation0]]
  $region22: #{rmsnorm.1} parent=0
    _
  %s5 = ssub.s32 1, %s3
  %s6 = scalar_select 0, %s5, %s3
  $region1: #{rmsnorm.1} parent=0
    #allocation2 [shape = 'u8[8192]{0}', space=vmem, size = 0x2000, scoped, tag = 'input window, operand 0, single buffered']
    #allocation3 [shape = 's32[1]{0}', space=sflag, size = 0x4, scoped, tag = 'scoped memory for rmsnorm.1']
    #allocation4 [shape = 's32[1]{0}', space=sflag, size = 0x4, scoped, tag = 'scoped memory for rmsnorm.1']
    #allocation5 [shape = 'u8[8192]{0}', space=vmem, size = 0x2000, scoped, tag = 'output window, operand 0, single buffered']
    %7 = vsyncpa [#allocation3], 0
    %8 = vsyncpa [#allocation4], 0
    // Predicated region
    $region2: #{rmsnorm.1} parent=1 // pred_check
      _
    $region3: #{rmsnorm.1} parent=1 // pred_check_branch
      %10 = sbr.rel (0) target = $region5
    $region4: #{rmsnorm.1} parent=1 // pred_region
      %s12 = ssub.s32 256, 256
      %13 = vsyncadd [#allocation3], %s12
      %s14 = sshll.u32 [#allocation2], 4
      %s15 = int_to_ptr.vmem [resolvable:$true] %s14
      %20 = dma.hbm_to_vmem [thread:$0]  %s0, 256, %s15, [#allocation3], 128, 128, 8
    $region5: #{rmsnorm.1} parent=1 // pred_fallthru
      _
    // Predicated region
    $region6: #{rmsnorm.1} parent=1 // pred_check
      _
    $region7: #{rmsnorm.1} parent=1 // pred_check_branch
      %22 = sbr.rel (0) target = $region9
    $region8: #{rmsnorm.1} parent=1 // pred_region
      _
    $region9: #{rmsnorm.1} parent=1 // pred_fallthru
      _
    // Predicated region
    $region10: #{rmsnorm.1} parent=1 // pred_check
      _
    $region11: #{rmsnorm.1} parent=1 // pred_check_branch
      %24 = sbr.rel (0) target = $region13
    $region12: #{rmsnorm.1} parent=1 // pred_region
      %25 = dma.done [#allocation3], 256
    $region13: #{rmsnorm.1} parent=1 // pred_fallthru
      _
    %v26 = vld [vmem:[#allocation2] sm:$0xff]
    %v27 = vld [vmem:[#allocation2 + $0x8] sm:$0xff]
    %v28 = vmul.f32 %v26, %v26
    %v29 = vmul.f32 %v27, %v27
    %30 = vadd.xlane.f32.xlu0 %v28
    %v31 = vpop.xlane.xlu0 %30
    %32 = vadd.xlane.f32.xlu0 %v29
    %v33 = vpop.xlane.xlu0 %32
    %v34 = vrcp.pop 128.0
    %v35 = vmul.f32 %v31, %v34
    %v36 = vmul.f32 %v33, %v34
    %v37 = vadd.f32 %v35, 1e-08
    %v38 = vadd.f32 %v36, 1e-08
    %v39 = vrsqrt.pop %v37
    %v40 = vrsqrt.pop %v38
    %v41 = vld [vmem:[%s1] sm:$0x1]
    %v42 = vmul.f32 %v26, %v39
    %v43 = vmul.f32 %v27, %v40
    %v45 = vlaneseq
    %v46 = vshrl.u32 %v45, 7
    %v47 = vsub.s32 0, %v46
    %v48 = vrot.slane %v41, %v47
    %v50 = vmul.f32 %v42, %v48
    %v51 = vmul.f32 %v43, %v48
    %52 = vst [vmem:[#allocation5] sm:$0xff] %v50
    %53 = vst [vmem:[#allocation5 + $0x8] sm:$0xff] %v51
    // Predicated region
    $region14: #{rmsnorm.1} parent=1 // pred_check
      _
    $region15: #{rmsnorm.1} parent=1 // pred_check_branch
      %55 = sbr.rel (0) target = $region17
    $region16: #{rmsnorm.1} parent=1 // pred_region
      %s57 = ssub.s32 256, 256
      %58 = vsyncadd [#allocation4], %s57
      %s59 = sshll.u32 [#allocation5], 4
      %s60 = int_to_ptr.vmem [resolvable:$true] %s59
      %65 = dma.vmem_to_hbm [thread:$0]  %s60, 256, %s2, [#allocation4], 128, 128, 8
    $region17: #{rmsnorm.1} parent=1 // pred_fallthru
      _
    // Predicated region
    $region18: #{rmsnorm.1} parent=1 // pred_check
      _
    $region19: #{rmsnorm.1} parent=1 // pred_check_branch
      %67 = sbr.rel (0) target = $region21
    $region20: #{rmsnorm.1} parent=1 // pred_region
      %68 = dma.done [#allocation4], 256
    $region21: #{rmsnorm.1} parent=1 // pred_fallthru
      _
    %69 = vsyncpa [#allocation3], 1
    %70 = vsyncpa [#allocation4], 1

</llo_original>
